<compile_context>
chip_gen: v5e
topology: v5e:2x2
jax: 0.10.0
libtpu: 0.0.40
codegen_flags: <defaults>
</compile_context>

<pallas_src>
import math
from functools import partial

import jax
import jax.numpy as jnp
from jax import lax
from jax.experimental import pallas as pl
from jax.experimental.pallas import tpu as pltpu


def _round_up(x, n):
    return (x + n - 1) // n * n


def _vmem_cap_bytes():
    """Generation-aware VMEM cap with headroom for Mosaic internal scratch."""
    try:
        phys = int(pltpu.get_tpu_info().vmem_capacity_bytes)
    except Exception:
        phys = 64 * 1024 * 1024          # conservative default (v7x-sized)
    return int(min(phys - 16 * 1024 * 1024, 100 * 1024 * 1024))


def _arcface_kernel(emb_ref, ker_ref, scale_ref, lab_ref, out_ref, *,
                    s, cos_m, sin_m, mm, threshold, tc):
    # emb_ref:   (TB, E)  compute_dtype, rows already L2-normalized
    # ker_ref:   (E, TC)  compute_dtype (NOT normalized)
    # scale_ref: (1, TC)  f32, = s / ||kernel_col||  (precomputed from f32)
    # lab_ref:   (TB, 1)  int32
    # out_ref:   (TB, TC) out_dtype
    scale = scale_ref[...]                                          # (1, TC)

    # MXU matmul in the narrow dtype, f32 accumulate; fold s and the column
    # normalization into the (TB, TC) output with one broadcast multiply.
    cos_scaled = jnp.dot(emb_ref[...], ker_ref[...],
                         preferred_element_type=jnp.float32) * scale
    cos_scaled = jnp.clip(cos_scaled, -s, s)       # == s * clip(cos, -1, 1)

    # Rank-1 label-column margin correction: heavy math on (TB, 1) only.
    j = pl.program_id(0)                           # class-tile index (outer)
    tb = cos_scaled.shape[0]
    col_ids = j * tc + lax.broadcasted_iota(jnp.int32, (tb, tc), 1)
    label_mask = col_ids == lab_ref[...]           # (TB, TC)

    cos_lab = jnp.sum(jnp.where(label_mask, cos_scaled, 0.0),
                      axis=1, keepdims=True) * (1.0 / s)            # (TB, 1)
    sin_lab = jnp.sqrt(jnp.maximum(1.0 - cos_lab * cos_lab, 0.0))
    cos_lab_m = cos_lab * cos_m - sin_lab * sin_m
    keep_val = cos_lab - mm
    cos_lab_m = jnp.where(cos_lab - threshold <= 0.0, keep_val, cos_lab_m)

    out = jnp.where(label_mask, cos_lab_m * s, cos_scaled)
    out_ref[...] = out.astype(out_ref.dtype)


def arcface_loss_forward(embeddings, kernel, label, *, s=64.0, m=0.5,
                         tile_b=None, tile_c=None,
                         compute_dtype=jnp.bfloat16,
                         out_dtype=jnp.float32):
    """embeddings: [B, E], kernel: [E, C], label: [B] int -> [B, C] out_dtype."""
    B, E = embeddings.shape
    E2, C = kernel.shape
    assert E == E2

    cos_m = math.cos(m)
    sin_m = math.sin(m)
    mm = sin_m * m
    threshold = math.cos(math.pi - m)

    # ---- hoisted, batch-independent preprocessing (fused by XLA) -----------
    # Row L2-normalization in f32, then cast to the matmul dtype.
    emb32 = embeddings.astype(jnp.float32)
    emb_n = (emb32 * lax.rsqrt(jnp.sum(emb32 * emb32, axis=1, keepdims=True))
             ).astype(compute_dtype)

    # Column inverse norms from the f32 weights (exactly matches reference),
    # pre-multiplied by s.  Tiny (1, C) f32 stream.
    ker32 = kernel.astype(jnp.float32)
    scale = s * lax.rsqrt(jnp.sum(ker32 * ker32, axis=0, keepdims=True))
    scale = scale.astype(jnp.float32)                               # (1, C)

    # Keep the dominant (E x C) weight stream in the narrow compute dtype.
    ker = kernel.astype(compute_dtype)
    label_i = label.astype(jnp.int32)

    # ---- tile selection & padding ------------------------------------------
    if tile_c is None:
        tile_c = 2048 if C > 2048 else _round_up(C, 256)
    tile_c = _round_up(max(128, min(tile_c, _round_up(C, 256))), 128)
    C_pad = _round_up(C, tile_c)

    if tile_b is None:
        tile_b = min(_round_up(B, 8), 512)
    tile_b = _round_up(max(8, min(tile_b, _round_up(B, 8))), 8)
    B_pad = _round_up(B, tile_b)

    if B_pad != B:
        emb_n = jnp.pad(emb_n, ((0, B_pad - B), (0, 0)))
        label_i = jnp.pad(label_i, (0, B_pad - B))
    if C_pad != C:
        ker = jnp.pad(ker, ((0, 0), (0, C_pad - C)))
        scale = jnp.pad(scale, ((0, 0), (0, C_pad - C)))   # zero scale -> 0 out
    label2d = label_i.reshape(B_pad, 1)

    # ---- VMEM budget: double-buffered tiles + headroom, generation-aware ---
    in_bytes = jnp.dtype(compute_dtype).itemsize
    out_bytes = jnp.dtype(out_dtype).itemsize
    tiles = (tile_b * E * in_bytes + E * tile_c * in_bytes +
             tile_c * 4 + tile_b * 4 + tile_b * tile_c * out_bytes)
    cap = _vmem_cap_bytes()
    vmem_limit = int(min(max(4 * tiles, 32 * 1024 * 1024), cap))

    kern = partial(_arcface_kernel, s=s, cos_m=cos_m, sin_m=sin_m,
                   mm=mm, threshold=threshold, tc=tile_c)

    # Grid: class tiles OUTER ("parallel" -> v7x TCs split disjoint classes),
    # batch tiles INNER ("arbitrary" -> ker block index constant across the
    # inner loop, so the weight tile stays resident and is fetched once).
    grid = (C_pad // tile_c, B_pad // tile_b)

    out = pl.pallas_call(
        kern,
        out_shape=jax.ShapeDtypeStruct((B_pad, C_pad), out_dtype),
        grid=grid,
        in_specs=[
            pl.BlockSpec((tile_b, E), lambda j, i: (i, 0)),       # embeddings
            pl.BlockSpec((E, tile_c), lambda j, i: (0, j)),       # weight tile
            pl.BlockSpec((1, tile_c), lambda j, i: (0, j)),       # s/col_norm
            pl.BlockSpec((tile_b, 1), lambda j, i: (i, 0)),       # labels
        ],
        out_specs=pl.BlockSpec((tile_b, tile_c), lambda j, i: (i, j)),
        compiler_params=pltpu.CompilerParams(
            dimension_semantics=("parallel", "arbitrary"),
            vmem_limit_bytes=vmem_limit),
    )(emb_n, ker, scale, label2d)

    if B_pad != B or C_pad != C:
        out = out[:B, :C]
    return out


def arcface_loss_reference(embeddings, kernel, label, *, s=64.0, m=0.5):
    cos_m = math.cos(m)
    sin_m = math.sin(m)
    mm = sin_m * m
    threshold = math.cos(math.pi - m)

    emb_n = embeddings / jnp.linalg.norm(embeddings, axis=1, keepdims=True)
    ker_n = kernel / jnp.linalg.norm(kernel, axis=0, keepdims=True)
    cos_theta = jnp.clip(emb_n @ ker_n, -1.0, 1.0)
    sin_theta = jnp.sqrt(1.0 - cos_theta ** 2)
    cos_theta_m = cos_theta * cos_m - sin_theta * sin_m
    keep_val = cos_theta - mm
    cos_theta_m = jnp.where(cos_theta - threshold <= 0.0, keep_val, cos_theta_m)
    nB = embeddings.shape[0]
    output = cos_theta.at[jnp.arange(nB), label].set(
        cos_theta_m[jnp.arange(nB), label])
    return output * s


if __name__ == "__main__":
    # Small synthetic shapes consistent with the module's forward:
    # batch=8, embedding_size=128, class_num=1024.
    B, E, C = 8, 128, 1024
    key = jax.random.PRNGKey(0)
    k_emb, k_ker, k_lab = jax.random.split(key, 3)

    embeddings = jax.random.normal(k_emb, (B, E), dtype=jnp.float32)

    # Deterministic init mimicking Parameter.uniform_(-1,1).renorm_(2,1,1e-5).mul_(1e5)
    # (net effect: each column has unit L2 norm).
    kernel = jax.random.uniform(k_ker, (E, C), dtype=jnp.float32,
                                minval=-1.0, maxval=1.0)
    kernel = kernel / jnp.linalg.norm(kernel, axis=0, keepdims=True)

    label = jax.random.randint(k_lab, (B,), 0, C, dtype=jnp.int32)

    ref = arcface_loss_reference(embeddings, kernel, label)

    # Tight check with f32 compute (same kernel body, f32 MXU).
    out_f32 = arcface_loss_forward(embeddings, kernel, label,
                                   compute_dtype=jnp.float32)
    out_f32 = jax.block_until_ready(out_f32)
    assert out_f32.shape == (B, C)
    assert jnp.allclose(out_f32, ref, atol=1e-3, rtol=1e-3), (
        float(jnp.max(jnp.abs(out_f32 - ref))))

    # Default optimized path: bf16 weight stream / bf16 MXU, f32 margin math.
    out = arcface_loss_forward(embeddings, kernel, label)
    out = jax.block_until_ready(out)
    assert out.shape == (B, C)
    assert jnp.allclose(out, ref, atol=2.5e-1, rtol=2.5e-2), (
        float(jnp.max(jnp.abs(out - ref))))

    # Ragged shapes (non-dividing B and C) exercise the padding/slicing path.
    Br, Cr = 6, 1000
    emb_r = embeddings[:Br]
    ker_r = kernel[:, :Cr]
    lab_r = jnp.minimum(label[:Br], Cr - 1)
    ref_r = arcface_loss_reference(emb_r, ker_r, lab_r)
    out_r = arcface_loss_forward(emb_r, ker_r, lab_r,
                                 compute_dtype=jnp.float32)
    out_r = jax.block_until_ready(out_r)
    assert out_r.shape == (Br, Cr)
    assert jnp.allclose(out_r, ref_r, atol=1e-3, rtol=1e-3), (
        float(jnp.max(jnp.abs(out_r - ref_r))))

    print("KERNEL_OK")
</pallas_src>

<mosaic_0001>
module attributes {stable_mosaic.version = 11 : i64} {
  func.func @_arcface_kernel(%arg0: i32, %arg1: i32, %arg2: memref<8x128xf32, #tpu.memory_space<vmem>>, %arg3: memref<128x1024xf32, #tpu.memory_space<vmem>>, %arg4: memref<1x1024xf32, #tpu.memory_space<vmem>>, %arg5: memref<8x1xi32, #tpu.memory_space<vmem>>, %arg6: memref<8x1024xf32, #tpu.memory_space<vmem>>) attributes {dimension_semantics = [#tpu.dimension_semantics<parallel>, #tpu.dimension_semantics<arbitrary>], iteration_bounds = array<i64: 1, 1>, scalar_prefetch = 0 : i64, scratch_operands = 0 : i64, tpu.core_type = #tpu.core_type<tc>, window_params = [{transform_indices = @transform_0, window_bounds = array<i64: 8, 128>}, {transform_indices = @transform_1, window_bounds = array<i64: 128, 1024>}, {transform_indices = @transform_2, window_bounds = array<i64: 1, 1024>}, {transform_indices = @transform_3, window_bounds = array<i64: 8, 1>}, {transform_indices = @transform_4, window_bounds = array<i64: 8, 1024>}]} {
    %c0 = arith.constant 0 : index
    %c0_0 = arith.constant 0 : index
    %0 = vector.load %arg4[%c0, %c0_0] : memref<1x1024xf32, #tpu.memory_space<vmem>>, vector<1x1024xf32>
    %c0_1 = arith.constant 0 : index
    %c0_2 = arith.constant 0 : index
    %1 = vector.load %arg2[%c0_1, %c0_2] : memref<8x128xf32, #tpu.memory_space<vmem>>, vector<8x128xf32>
    %c0_3 = arith.constant 0 : index
    %c0_4 = arith.constant 0 : index
    %2 = vector.load %arg3[%c0_3, %c0_4] : memref<128x1024xf32, #tpu.memory_space<vmem>>, vector<128x1024xf32>
    %cst = arith.constant dense<0.000000e+00> : vector<8x1024xf32>
    %3 = tpu.matmul %1, %2, %cst {dimension_numbers = #tpu.dot_dimension_numbers<[1], [0], [0], [1], [0, 0, 1, 1], [], []>} : vector<8x128xf32>, vector<128x1024xf32>, vector<8x1024xf32> -> vector<8x1024xf32>
    %4 = vector.broadcast %0 : vector<1x1024xf32> to vector<8x1024xf32>
    %5 = arith.mulf %3, %4 : vector<8x1024xf32>
    %cst_5 = arith.constant -6.400000e+01 : f32
    %cst_6 = arith.constant 6.400000e+01 : f32
    %6 = vector.broadcast %cst_5 : f32 to vector<8x1024xf32>
    %7 = arith.maximumf %6, %5 : vector<8x1024xf32>
    %8 = vector.broadcast %cst_6 : f32 to vector<8x1024xf32>
    %9 = arith.minimumf %8, %7 : vector<8x1024xf32>
    %c1024_i32 = arith.constant 1024 : i32
    %10 = arith.muli %arg0, %c1024_i32 : i32
    %11 = tpu.iota {dimensions = array<i32: 1>} : vector<8x1024xi32>
    %12 = vector.broadcast %10 : i32 to vector<8x1024xi32>
    %13 = arith.addi %12, %11 : vector<8x1024xi32>
    %c0_7 = arith.constant 0 : index
    %c0_8 = arith.constant 0 : index
    %14 = vector.load %arg5[%c0_7, %c0_8] : memref<8x1xi32, #tpu.memory_space<vmem>>, vector<8x1xi32>
    %15 = vector.broadcast %14 : vector<8x1xi32> to vector<8x1024xi32>
    %16 = arith.cmpi eq, %13, %15 : vector<8x1024xi32>
    %cst_9 = arith.constant 0.000000e+00 : f32
    %17 = vector.broadcast %cst_9 : f32 to vector<8x1024xf32>
    %18 = arith.select %16, %9, %17 : vector<8x1024xi1>, vector<8x1024xf32>
    %cst_10 = arith.constant dense<0.000000e+00> : vector<8xf32>
    %19 = vector.multi_reduction <add>, %18, %cst_10 [1] : vector<8x1024xf32> to vector<8xf32>
    %20 = vector.shape_cast %19 : vector<8xf32> to vector<8x1xf32>
    %cst_11 = arith.constant 1.562500e-02 : f32
    %21 = vector.broadcast %cst_11 : f32 to vector<8x1xf32>
    %22 = arith.mulf %20, %21 : vector<8x1xf32>
    %23 = arith.mulf %22, %22 : vector<8x1xf32>
    %cst_12 = arith.constant 1.000000e+00 : f32
    %24 = vector.broadcast %cst_12 : f32 to vector<8x1xf32>
    %25 = arith.subf %24, %23 : vector<8x1xf32>
    %cst_13 = arith.constant 0.000000e+00 : f32
    %26 = vector.broadcast %cst_13 : f32 to vector<8x1xf32>
    %27 = arith.maximumf %25, %26 : vector<8x1xf32>
    %28 = math.sqrt %27 : vector<8x1xf32>
    %cst_14 = arith.constant 0.87758255 : f32
    %29 = vector.broadcast %cst_14 : f32 to vector<8x1xf32>
    %30 = arith.mulf %22, %29 : vector<8x1xf32>
    %cst_15 = arith.constant 0.47942555 : f32
    %31 = vector.broadcast %cst_15 : f32 to vector<8x1xf32>
    %32 = arith.mulf %28, %31 : vector<8x1xf32>
    %33 = arith.subf %30, %32 : vector<8x1xf32>
    %cst_16 = arith.constant 0.239712775 : f32
    %34 = vector.broadcast %cst_16 : f32 to vector<8x1xf32>
    %35 = arith.subf %22, %34 : vector<8x1xf32>
    %cst_17 = arith.constant -0.87758255 : f32
    %36 = vector.broadcast %cst_17 : f32 to vector<8x1xf32>
    %37 = arith.subf %22, %36 : vector<8x1xf32>
    %cst_18 = arith.constant 0.000000e+00 : f32
    %38 = vector.broadcast %cst_18 : f32 to vector<8x1xf32>
    %39 = arith.cmpf ole, %37, %38 : vector<8x1xf32>
    %40 = arith.select %39, %35, %33 : vector<8x1xi1>, vector<8x1xf32>
    %cst_19 = arith.constant 6.400000e+01 : f32
    %41 = vector.broadcast %cst_19 : f32 to vector<8x1xf32>
    %42 = arith.mulf %40, %41 : vector<8x1xf32>
    %43 = vector.shape_cast %42 : vector<8x1xf32> to vector<8x1xf32>
    %44 = vector.broadcast %43 : vector<8x1xf32> to vector<8x1024xf32>
    %45 = arith.select %16, %44, %9 : vector<8x1024xi1>, vector<8x1024xf32>
    %c0_20 = arith.constant 0 : index
    %c0_21 = arith.constant 0 : index
    %46 = vector.load %arg6[%c0_20, %c0_21] : memref<8x1024xf32, #tpu.memory_space<vmem>>, vector<8x1024xf32>
    tpu.vector_store %arg6[%c0_20, %c0_21], %45 {strides = array<i32>} : memref<8x1024xf32, #tpu.memory_space<vmem>>, vector<8x1024xf32>,
    return
  }
  func.func @transform_0(%arg0: i32, %arg1: i32) -> (i32, i32) {
    %c0_i32 = arith.constant 0 : i32
    %c0_i32_0 = arith.constant 0 : i32
    return %arg1, %c0_i32 : i32, i32
  }
  func.func @transform_1(%arg0: i32, %arg1: i32) -> (i32, i32) {
    %c0_i32 = arith.constant 0 : i32
    %c0_i32_0 = arith.constant 0 : i32
    return %c0_i32, %arg0 : i32, i32
  }
  func.func @transform_2(%arg0: i32, %arg1: i32) -> (i32, i32) {
    %c0_i32 = arith.constant 0 : i32
    %c0_i32_0 = arith.constant 0 : i32
    return %c0_i32, %arg0 : i32, i32
  }
  func.func @transform_3(%arg0: i32, %arg1: i32) -> (i32, i32) {
    %c0_i32 = arith.constant 0 : i32
    %c0_i32_0 = arith.constant 0 : i32
    return %arg1, %c0_i32 : i32, i32
  }
  func.func @transform_4(%arg0: i32, %arg1: i32) -> (i32, i32) {
    %c0_i32 = arith.constant 0 : i32
    return %arg1, %arg0 : i32, i32
  }
}

</mosaic_0001>

<llo_original>
// kernel: tpu_custom_call.1
$region0: #{tpu_custom_call.1}
  #allocation0 [shape = 'u32[]', space=smem, size = 0x4, offset = 0x4, fixed_abs, tag = 'smem constant byte address 0x4 - core index']
  #allocation1 [shape = 'u32[72,128]{1,0:T(1,128)}', space=vmem, size = 0x9000, scoped, tag = 'internal scratch']
  %s0 = inlined_call_operand.vmem [shape: f32[8,128], index: 0, kind: input, shape index: {}]
  %s1 = inlined_call_operand.hbm [shape: f32[128,1024], index: 1, kind: input, shape index: {}]
  %s2 = inlined_call_operand.hbm [shape: f32[1,1024], index: 2, kind: input, shape index: {}]
  %s3 = inlined_call_operand.vmem [shape: s32[8,1], index: 3, kind: input, shape index: {}]
  %s4 = inlined_call_operand.hbm [shape: f32[8,1024], index: 4, kind: output, shape index: {}]
  %s5 = sld [smem:[#allocation0]]
  $region34: #{tpu_custom_call.1} parent=0
    _
  %s7 = ssub.s32 1, %s5
  %s8 = scalar_select 0, %s7, %s5
  $region1: #{tpu_custom_call.1} parent=0
    #allocation2 [shape = 'u8[524288]{0}', space=vmem, size = 0x80000, scoped, tag = 'input window, operand 1, single buffered']
    #allocation3 [shape = 's32[1]{0}', space=sflag, size = 0x4, scoped, tag = 'scoped memory for tpu_custom_call.1']
    #allocation4 [shape = 's32[1]{0}', space=sflag, size = 0x4, scoped, tag = 'scoped memory for tpu_custom_call.1']
    #allocation5 [shape = 'u8[4096]{0}', space=vmem, size = 0x1000, scoped, tag = 'input window, operand 2, single buffered']
    #allocation6 [shape = 's32[1]{0}', space=sflag, size = 0x4, scoped, tag = 'scoped memory for tpu_custom_call.1']
    #allocation7 [shape = 'u8[32768]{0}', space=vmem, size = 0x8000, scoped, tag = 'output window, operand 0, single buffered']
    %9 = vsyncpa [#allocation3], 0
    %10 = vsyncpa [#allocation6], 0
    %11 = vsyncpa [#allocation4], 0
    // Predicated region
    $region2: #{tpu_custom_call.1} parent=1 // pred_check
      _
    $region3: #{tpu_custom_call.1} parent=1 // pred_check_branch
      %13 = sbr.rel (0) target = $region5
    $region4: #{tpu_custom_call.1} parent=1 // pred_region
      _
    $region5: #{tpu_custom_call.1} parent=1 // pred_fallthru
      _
    // Predicated region
    $region6: #{tpu_custom_call.1} parent=1 // pred_check
      _
    $region7: #{tpu_custom_call.1} parent=1 // pred_check_branch
      %15 = sbr.rel (0) target = $region9
    $region8: #{tpu_custom_call.1} parent=1 // pred_region
      %17 = vsyncadd [#allocation3], 0
      %s18 = sshll.u32 %s1, 4
      %s19 = int_to_ptr.hbm [resolvable:$true] %s18
      %s20 = sshll.u32 [#allocation2], 4
      %s21 = int_to_ptr.vmem [resolvable:$true] %s20
      %26 = dma.hbm_to_vmem [thread:$0]  %s19, 16384, %s21, [#allocation3], 1024, 1024, 64
    $region9: #{tpu_custom_call.1} parent=1 // pred_fallthru
      _
    // Predicated region
    $region10: #{tpu_custom_call.1} parent=1 // pred_check
      _
    $region11: #{tpu_custom_call.1} parent=1 // pred_check_branch
      %28 = sbr.rel (0) target = $region13
    $region12: #{tpu_custom_call.1} parent=1 // pred_region
      %30 = vsyncadd [#allocation6], 0
      %s32 = sshll.u32 %s2, 4
      %s33 = int_to_ptr.hbm [resolvable:$true] %s32
      %s34 = sshll.u32 [#allocation5], 4
      %s35 = int_to_ptr.vmem [resolvable:$true] %s34
      %37 = dma.hbm_to_vmem [thread:$0]  %s33, 128, %s35, [#allocation6]
    $region13: #{tpu_custom_call.1} parent=1 // pred_fallthru
      _
    // Predicated region
    $region14: #{tpu_custom_call.1} parent=1 // pred_check
      _
    $region15: #{tpu_custom_call.1} parent=1 // pred_check_branch
      %39 = sbr.rel (0) target = $region17
    $region16: #{tpu_custom_call.1} parent=1 // pred_region
      _
    $region17: #{tpu_custom_call.1} parent=1 // pred_fallthru
      _
    // Predicated region
    $region18: #{tpu_custom_call.1} parent=1 // pred_check
      _
    $region19: #{tpu_custom_call.1} parent=1 // pred_check_branch
      %41 = sbr.rel (0) target = $region21
    $region20: #{tpu_custom_call.1} parent=1 // pred_region
      %43 = dma.done [#allocation3], 16384
    $region21: #{tpu_custom_call.1} parent=1 // pred_fallthru
      _
    // Predicated region
    $region22: #{tpu_custom_call.1} parent=1 // pred_check
      _
    $region23: #{tpu_custom_call.1} parent=1 // pred_check_branch
      %45 = sbr.rel (0) target = $region25
    $region24: #{tpu_custom_call.1} parent=1 // pred_region
      %47 = dma.done [#allocation6], 128
    $region25: #{tpu_custom_call.1} parent=1 // pred_fallthru
      _
    %v48 = vld [vmem:[#allocation5] sm:$0xff]
    %v49 = vld [vmem:[%s0] sm:$0xff]
    %v50 = vld [vmem:[#allocation2] sm:$0xff]
    %v51 = vld [vmem:[#allocation2 + $0x8] sm:$0xff]
    %v52 = vld [vmem:[#allocation2 + $0x10] sm:$0xff]
    %v53 = vld [vmem:[#allocation2 + $0x18] sm:$0xff]
    %v54 = vld [vmem:[#allocation2 + $0x20] sm:$0xff]
    %v55 = vld [vmem:[#allocation2 + $0x28] sm:$0xff]
    %v56 = vld [vmem:[#allocation2 + $0x30] sm:$0xff]
    %v57 = vld [vmem:[#allocation2 + $0x38] sm:$0xff]
    %v58 = vld [vmem:[#allocation2 + $0x40] sm:$0xff]
    %v59 = vld [vmem:[#allocation2 + $0x48] sm:$0xff]
    %v60 = vld [vmem:[#allocation2 + $0x50] sm:$0xff]
    %v61 = vld [vmem:[#allocation2 + $0x58] sm:$0xff]
    %v62 = vld [vmem:[#allocation2 + $0x60] sm:$0xff]
    %v63 = vld [vmem:[#allocation2 + $0x68] sm:$0xff]
    %v64 = vld [vmem:[#allocation2 + $0x70] sm:$0xff]
    %v65 = vld [vmem:[#allocation2 + $0x78] sm:$0xff]
    %v66 = vld [vmem:[#allocation2 + $0x80] sm:$0xff]
    %v67 = vld [vmem:[#allocation2 + $0x88] sm:$0xff]
    %v68 = vld [vmem:[#allocation2 + $0x90] sm:$0xff]
    %v69 = vld [vmem:[#allocation2 + $0x98] sm:$0xff]
    %v70 = vld [vmem:[#allocation2 + $0xa0] sm:$0xff]
    %v71 = vld [vmem:[#allocation2 + $0xa8] sm:$0xff]
    %v72 = vld [vmem:[#allocation2 + $0xb0] sm:$0xff]
    %v73 = vld [vmem:[#allocation2 + $0xb8] sm:$0xff]
    %v74 = vld [vmem:[#allocation2 + $0xc0] sm:$0xff]
    %v75 = vld [vmem:[#allocation2 + $0xc8] sm:$0xff]
    %v76 = vld [vmem:[#allocation2 + $0xd0] sm:$0xff]
    %v77 = vld [vmem:[#allocation2 + $0xd8] sm:$0xff]
    %v78 = vld [vmem:[#allocation2 + $0xe0] sm:$0xff]
    %v79 = vld [vmem:[#allocation2 + $0xe8] sm:$0xff]
    %v80 = vld [vmem:[#allocation2 + $0xf0] sm:$0xff]
    %v81 = vld [vmem:[#allocation2 + $0xf8] sm:$0xff]
    %v82 = vld [vmem:[#allocation2 + $0x100] sm:$0xff]
    %v83 = vld [vmem:[#allocation2 + $0x108] sm:$0xff]
    %v84 = vld [vmem:[#allocation2 + $0x110] sm:$0xff]
    %v85 = vld [vmem:[#allocation2 + $0x118] sm:$0xff]
    %v86 = vld [vmem:[#allocation2 + $0x120] sm:$0xff]
    %v87 = vld [vmem:[#allocation2 + $0x128] sm:$0xff]
    %v88 = vld [vmem:[#allocation2 + $0x130] sm:$0xff]
    %v89 = vld [vmem:[#allocation2 + $0x138] sm:$0xff]
    %v90 = vld [vmem:[#allocation2 + $0x140] sm:$0xff]
    %v91 = vld [vmem:[#allocation2 + $0x148] sm:$0xff]
    %v92 = vld [vmem:[#allocation2 + $0x150] sm:$0xff]
    %v93 = vld [vmem:[#allocation2 + $0x158] sm:$0xff]
    %v94 = vld [vmem:[#allocation2 + $0x160] sm:$0xff]
    %v95 = vld [vmem:[#allocation2 + $0x168] sm:$0xff]
    %v96 = vld [vmem:[#allocation2 + $0x170] sm:$0xff]
    %v97 = vld [vmem:[#allocation2 + $0x178] sm:$0xff]
    %v98 = vld [vmem:[#allocation2 + $0x180] sm:$0xff]
    %v99 = vld [vmem:[#allocation2 + $0x188] sm:$0xff]
    %v100 = vld [vmem:[#allocation2 + $0x190] sm:$0xff]
    %v101 = vld [vmem:[#allocation2 + $0x198] sm:$0xff]
    %v102 = vld [vmem:[#allocation2 + $0x1a0] sm:$0xff]
    %v103 = vld [vmem:[#allocation2 + $0x1a8] sm:$0xff]
    %v104 = vld [vmem:[#allocation2 + $0x1b0] sm:$0xff]
    %v105 = vld [vmem:[#allocation2 + $0x1b8] sm:$0xff]
    %v106 = vld [vmem:[#allocation2 + $0x1c0] sm:$0xff]
    %v107 = vld [vmem:[#allocation2 + $0x1c8] sm:$0xff]
    %v108 = vld [vmem:[#allocation2 + $0x1d0] sm:$0xff]
    %v109 = vld [vmem:[#allocation2 + $0x1d8] sm:$0xff]
    %v110 = vld [vmem:[#allocation2 + $0x1e0] sm:$0xff]
    %v111 = vld [vmem:[#allocation2 + $0x1e8] sm:$0xff]
    %v112 = vld [vmem:[#allocation2 + $0x1f0] sm:$0xff]
    %v113 = vld [vmem:[#allocation2 + $0x1f8] sm:$0xff]
    %v114 = vld [vmem:[#allocation2 + $0x200] sm:$0xff]
    %v115 = vld [vmem:[#allocation2 + $0x208] sm:$0xff]
    %v116 = vld [vmem:[#allocation2 + $0x210] sm:$0xff]
    %v117 = vld [vmem:[#allocation2 + $0x218] sm:$0xff]
    %v118 = vld [vmem:[#allocation2 + $0x220] sm:$0xff]
    %v119 = vld [vmem:[#allocation2 + $0x228] sm:$0xff]
    %v120 = vld [vmem:[#allocation2 + $0x230] sm:$0xff]
    %v121 = vld [vmem:[#allocation2 + $0x238] sm:$0xff]
    %v122 = vld [vmem:[#allocation2 + $0x240] sm:$0xff]
    %v123 = vld [vmem:[#allocation2 + $0x248] sm:$0xff]
    %v124 = vld [vmem:[#allocation2 + $0x250] sm:$0xff]
    %v125 = vld [vmem:[#allocation2 + $0x258] sm:$0xff]
    %v126 = vld [vmem:[#allocation2 + $0x260] sm:$0xff]
    %v127 = vld [vmem:[#allocation2 + $0x268] sm:$0xff]
    %v128 = vld [vmem:[#allocation2 + $0x270] sm:$0xff]
    %v129 = vld [vmem:[#allocation2 + $0x278] sm:$0xff]
    %v130 = vld [vmem:[#allocation2 + $0x280] sm:$0xff]
    %v131 = vld [vmem:[#allocation2 + $0x288] sm:$0xff]
    %v132 = vld [vmem:[#allocation2 + $0x290] sm:$0xff]
    %v133 = vld [vmem:[#allocation2 + $0x298] sm:$0xff]
    %v134 = vld [vmem:[#allocation2 + $0x2a0] sm:$0xff]
    %v135 = vld [vmem:[#allocation2 + $0x2a8] sm:$0xff]
    %v136 = vld [vmem:[#allocation2 + $0x2b0] sm:$0xff]
    %v137 = vld [vmem:[#allocation2 + $0x2b8] sm:$0xff]
    %v138 = vld [vmem:[#allocation2 + $0x2c0] sm:$0xff]
    %v139 = vld [vmem:[#allocation2 + $0x2c8] sm:$0xff]
    %v140 = vld [vmem:[#allocation2 + $0x2d0] sm:$0xff]
    %v141 = vld [vmem:[#allocation2 + $0x2d8] sm:$0xff]
    %v142 = vld [vmem:[#allocation2 + $0x2e0] sm:$0xff]
    %v143 = vld [vmem:[#allocation2 + $0x2e8] sm:$0xff]
    %v144 = vld [vmem:[#allocation2 + $0x2f0] sm:$0xff]
    %v145 = vld [vmem:[#allocation2 + $0x2f8] sm:$0xff]
    %v146 = vld [vmem:[#allocation2 + $0x300] sm:$0xff]
    %v147 = vld [vmem:[#allocation2 + $0x308] sm:$0xff]
    %v148 = vld [vmem:[#allocation2 + $0x310] sm:$0xff]
    %v149 = vld [vmem:[#allocation2 + $0x318] sm:$0xff]
    %v150 = vld [vmem:[#allocation2 + $0x320] sm:$0xff]
    %v151 = vld [vmem:[#allocation2 + $0x328] sm:$0xff]
    %v152 = vld [vmem:[#allocation2 + $0x330] sm:$0xff]
    %v153 = vld [vmem:[#allocation2 + $0x338] sm:$0xff]
    %v154 = vld [vmem:[#allocation2 + $0x340] sm:$0xff]
    %v155 = vld [vmem:[#allocation2 + $0x348] sm:$0xff]
    %v156 = vld [vmem:[#allocation2 + $0x350] sm:$0xff]
    %v157 = vld [vmem:[#allocation2 + $0x358] sm:$0xff]
    %v158 = vld [vmem:[#allocation2 + $0x360] sm:$0xff]
    %v159 = vld [vmem:[#allocation2 + $0x368] sm:$0xff]
    %v160 = vld [vmem:[#allocation2 + $0x370] sm:$0xff]
    %v161 = vld [vmem:[#allocation2 + $0x378] sm:$0xff]
    %v162 = vld [vmem:[#allocation2 + $0x380] sm:$0xff]
    %v163 = vld [vmem:[#allocation2 + $0x388] sm:$0xff]
    %v164 = vld [vmem:[#allocation2 + $0x390] sm:$0xff]
    %v165 = vld [vmem:[#allocation2 + $0x398] sm:$0xff]
    %v166 = vld [vmem:[#allocation2 + $0x3a0] sm:$0xff]
    %v167 = vld [vmem:[#allocation2 + $0x3a8] sm:$0xff]
    %v168 = vld [vmem:[#allocation2 + $0x3b0] sm:$0xff]
    %v169 = vld [vmem:[#allocation2 + $0x3b8] sm:$0xff]
    %v170 = vld [vmem:[#allocation2 + $0x3c0] sm:$0xff]
    %v171 = vld [vmem:[#allocation2 + $0x3c8] sm:$0xff]
    %v172 = vld [vmem:[#allocation2 + $0x3d0] sm:$0xff]
    %v173 = vld [vmem:[#allocation2 + $0x3d8] sm:$0xff]
    %v174 = vld [vmem:[#allocation2 + $0x3e0] sm:$0xff]
    %v175 = vld [vmem:[#allocation2 + $0x3e8] sm:$0xff]
    %v176 = vld [vmem:[#allocation2 + $0x3f0] sm:$0xff]
    %v177 = vld [vmem:[#allocation2 + $0x3f8] sm:$0xff]
    %178 = vmatpush.msra.mxu0 %v170
    %179 = vmatpush.msra.mxu0 %v162
    %180 = vmatpush.msra.mxu0 %v154
    %181 = vmatpush.msra.mxu0 %v146
    %182 = vmatpush.msra.mxu0 %v138
    %183 = vmatpush.msra.mxu0 %v130
    %184 = vmatpush.msra.mxu0 %v122
    %185 = vmatpush.msra.mxu0 %v114
    %186 = vmatpush.msra.mxu0 %v106
    %187 = vmatpush.msra.mxu0 %v98
    %188 = vmatpush.msra.mxu0 %v90
    %189 = vmatpush.msra.mxu0 %v82
    %190 = vmatpush.msra.mxu0 %v74
    %191 = vmatpush.msra.mxu0 %v66
    %192 = vmatpush.msra.mxu0 %v58
    %193 = vmatpush.msra.mxu0 %v50
    %194 = vmatmul.f32.gmra.mxu0 %v49
    %v195 = vpop.f32.mrf.mxu0
    %v196 = vadd.f32 0.0, %v195
    %197 = vdwg.mxu0
    %198 = vmatpush.msra.mxu0 %v171
    %199 = vmatpush.msra.mxu0 %v163
    %200 = vmatpush.msra.mxu0 %v155
    %201 = vmatpush.msra.mxu0 %v147
    %202 = vmatpush.msra.mxu0 %v139
    %203 = vmatpush.msra.mxu0 %v131
    %204 = vmatpush.msra.mxu0 %v123
    %205 = vmatpush.msra.mxu0 %v115
    %206 = vmatpush.msra.mxu0 %v107
    %207 = vmatpush.msra.mxu0 %v99
    %208 = vmatpush.msra.mxu0 %v91
    %209 = vmatpush.msra.mxu0 %v83
    %210 = vmatpush.msra.mxu0 %v75
    %211 = vmatpush.msra.mxu0 %v67
    %212 = vmatpush.msra.mxu0 %v59
    %213 = vmatpush.msra.mxu0 %v51
    %214 = vmatmul.f32.gmra.mxu0 %v49
    %v215 = vpop.f32.mrf.mxu0
    %v216 = vadd.f32 0.0, %v215
    %217 = vdwg.mxu0
    %218 = vmatpush.msra.mxu0 %v172
    %219 = vmatpush.msra.mxu0 %v164
    %220 = vmatpush.msra.mxu0 %v156
    %221 = vmatpush.msra.mxu0 %v148
    %222 = vmatpush.msra.mxu0 %v140
    %223 = vmatpush.msra.mxu0 %v132
    %224 = vmatpush.msra.mxu0 %v124
    %225 = vmatpush.msra.mxu0 %v116
    %226 = vmatpush.msra.mxu0 %v108
    %227 = vmatpush.msra.mxu0 %v100
    %228 = vmatpush.msra.mxu0 %v92
    %229 = vmatpush.msra.mxu0 %v84
    %230 = vmatpush.msra.mxu0 %v76
    %231 = vmatpush.msra.mxu0 %v68
    %232 = vmatpush.msra.mxu0 %v60
    %233 = vmatpush.msra.mxu0 %v52
    %234 = vmatmul.f32.gmra.mxu0 %v49
    %v235 = vpop.f32.mrf.mxu0
    %v236 = vadd.f32 0.0, %v235
    %237 = vdwg.mxu0
    %238 = vmatpush.msra.mxu0 %v173
    %239 = vmatpush.msra.mxu0 %v165
    %240 = vmatpush.msra.mxu0 %v157
    %241 = vmatpush.msra.mxu0 %v149
    %242 = vmatpush.msra.mxu0 %v141
    %243 = vmatpush.msra.mxu0 %v133
    %244 = vmatpush.msra.mxu0 %v125
    %245 = vmatpush.msra.mxu0 %v117
    %246 = vmatpush.msra.mxu0 %v109
    %247 = vmatpush.msra.mxu0 %v101
    %248 = vmatpush.msra.mxu0 %v93
    %249 = vmatpush.msra.mxu0 %v85
    %250 = vmatpush.msra.mxu0 %v77
    %251 = vmatpush.msra.mxu0 %v69
    %252 = vmatpush.msra.mxu0 %v61
    %253 = vmatpush.msra.mxu0 %v53
    %254 = vmatmul.f32.gmra.mxu0 %v49
    %v255 = vpop.f32.mrf.mxu0
    %v256 = vadd.f32 0.0, %v255
    %257 = vdwg.mxu0
    %258 = vmatpush.msra.mxu0 %v174
    %259 = vmatpush.msra.mxu0 %v166
    %260 = vmatpush.msra.mxu0 %v158
    %261 = vmatpush.msra.mxu0 %v150
    %262 = vmatpush.msra.mxu0 %v142
    %263 = vmatpush.msra.mxu0 %v134
    %264 = vmatpush.msra.mxu0 %v126
    %265 = vmatpush.msra.mxu0 %v118
    %266 = vmatpush.msra.mxu0 %v110
    %267 = vmatpush.msra.mxu0 %v102
    %268 = vmatpush.msra.mxu0 %v94
    %269 = vmatpush.msra.mxu0 %v86
    %270 = vmatpush.msra.mxu0 %v78
    %271 = vmatpush.msra.mxu0 %v70
    %272 = vmatpush.msra.mxu0 %v62
    %273 = vmatpush.msra.mxu0 %v54
    %274 = vmatmul.f32.gmra.mxu0 %v49
    %v275 = vpop.f32.mrf.mxu0
    %v276 = vadd.f32 0.0, %v275
    %277 = vdwg.mxu0
    %278 = vmatpush.msra.mxu0 %v175
    %279 = vmatpush.msra.mxu0 %v167
    %280 = vmatpush.msra.mxu0 %v159
    %281 = vmatpush.msra.mxu0 %v151
    %282 = vmatpush.msra.mxu0 %v143
    %283 = vmatpush.msra.mxu0 %v135
    %284 = vmatpush.msra.mxu0 %v127
    %285 = vmatpush.msra.mxu0 %v119
    %286 = vmatpush.msra.mxu0 %v111
    %287 = vmatpush.msra.mxu0 %v103
    %288 = vmatpush.msra.mxu0 %v95
    %289 = vmatpush.msra.mxu0 %v87
    %290 = vmatpush.msra.mxu0 %v79
    %291 = vmatpush.msra.mxu0 %v71
    %292 = vmatpush.msra.mxu0 %v63
    %293 = vmatpush.msra.mxu0 %v55
    %294 = vmatmul.f32.gmra.mxu0 %v49
    %v295 = vpop.f32.mrf.mxu0
    %v296 = vadd.f32 0.0, %v295
    %297 = vdwg.mxu0
    %298 = vmatpush.msra.mxu0 %v176
    %299 = vmatpush.msra.mxu0 %v168
    %300 = vmatpush.msra.mxu0 %v160
    %301 = vmatpush.msra.mxu0 %v152
    %302 = vmatpush.msra.mxu0 %v144
    %303 = vmatpush.msra.mxu0 %v136
    %304 = vmatpush.msra.mxu0 %v128
    %305 = vmatpush.msra.mxu0 %v120
    %306 = vmatpush.msra.mxu0 %v112
    %307 = vmatpush.msra.mxu0 %v104
    %308 = vmatpush.msra.mxu0 %v96
    %309 = vmatpush.msra.mxu0 %v88
    %310 = vmatpush.msra.mxu0 %v80
    %311 = vmatpush.msra.mxu0 %v72
    %312 = vmatpush.msra.mxu0 %v64
    %313 = vmatpush.msra.mxu0 %v56
    %314 = vmatmul.f32.gmra.mxu0 %v49
    %v315 = vpop.f32.mrf.mxu0
    %v316 = vadd.f32 0.0, %v315
    %317 = vdwg.mxu0
    %318 = vmatpush.msra.mxu0 %v177
    %319 = vmatpush.msra.mxu0 %v169
    %320 = vmatpush.msra.mxu0 %v161
    %321 = vmatpush.msra.mxu0 %v153
    %322 = vmatpush.msra.mxu0 %v145
    %323 = vmatpush.msra.mxu0 %v137
    %324 = vmatpush.msra.mxu0 %v129
    %325 = vmatpush.msra.mxu0 %v121
    %326 = vmatpush.msra.mxu0 %v113
    %327 = vmatpush.msra.mxu0 %v105
    %328 = vmatpush.msra.mxu0 %v97
    %329 = vmatpush.msra.mxu0 %v89
    %330 = vmatpush.msra.mxu0 %v81
    %331 = vmatpush.msra.mxu0 %v73
    %332 = vmatpush.msra.mxu0 %v65
    %333 = vmatpush.msra.mxu0 %v57
    %334 = vmatmul.f32.gmra.mxu0 %v49
    %v335 = vpop.f32.mrf.mxu0
    %v336 = vadd.f32 0.0, %v335
    %337 = vdwg.mxu0
    %v339 = vperm.slane %v48, 0
    %v340 = vperm.slane %v48, 1
    %v341 = vperm.slane %v48, 2
    %v342 = vperm.slane %v48, 3
    %v343 = vperm.slane %v48, 4
    %v344 = vperm.slane %v48, 5
    %v345 = vperm.slane %v48, 6
    %v346 = vperm.slane %v48, 7
    %v355 = vmul.f32 %v196, %v339
    %v356 = vmul.f32 %v216, %v340
    %v357 = vmul.f32 %v236, %v341
    %v358 = vmul.f32 %v256, %v342
    %v359 = vmul.f32 %v276, %v343
    %v360 = vmul.f32 %v296, %v344
    %v361 = vmul.f32 %v316, %v345
    %v362 = vmul.f32 %v336, %v346
    %v363 = vmax.f32 %v355, -64.0
    %v364 = vmax.f32 %v356, -64.0
    %v365 = vmax.f32 %v357, -64.0
    %v366 = vmax.f32 %v358, -64.0
    %v367 = vmax.f32 %v359, -64.0
    %v368 = vmax.f32 %v360, -64.0
    %v369 = vmax.f32 %v361, -64.0
    %v370 = vmax.f32 %v362, -64.0
    %v371 = vmin.f32 %v363, 64.0
    %v372 = vmin.f32 %v364, 64.0
    %v373 = vmin.f32 %v365, 64.0
    %v374 = vmin.f32 %v366, 64.0
    %v375 = vmin.f32 %v367, 64.0
    %v376 = vmin.f32 %v368, 64.0
    %v377 = vmin.f32 %v369, 64.0
    %v378 = vmin.f32 %v370, 64.0
    %s379 = smul.u32 0, 1024
    %v380 = vlaneseq
    %v381 = vand.u32 %v380, 127
    %v382 = vadd.s32 %v381, 128
    %v383 = vadd.s32 %v381, 256
    %v384 = vadd.s32 %v381, 384
    %v385 = vadd.s32 %v381, 512
    %v386 = vadd.s32 %v381, 640
    %v387 = vadd.s32 %v381, 768
    %v388 = vadd.s32 %v381, 896
    %v389 = vstv %s379
    %v390 = vadd.s32 %v389, %v381
    %v391 = vadd.s32 %v389, %v382
    %v392 = vadd.s32 %v389, %v383
    %v393 = vadd.s32 %v389, %v384
    %v394 = vadd.s32 %v389, %v385
    %v395 = vadd.s32 %v389, %v386
    %v396 = vadd.s32 %v389, %v387
    %v397 = vadd.s32 %v389, %v388
    %v398 = vld [vmem:[%s3] sm:$0xff]
    %399 = vset.pattern.permute.xlu0 0
    %400 = vperm.xlu0 %399, %v398
    %v401 = vpop.permute.xlu0 %400
    %vm402 = vcmp.eq.s32.totalorder %v390, %v401
    %vm403 = vcmp.eq.s32.totalorder %v391, %v401
    %vm404 = vcmp.eq.s32.totalorder %v392, %v401
    %vm405 = vcmp.eq.s32.totalorder %v393, %v401
    %vm406 = vcmp.eq.s32.totalorder %v394, %v401
    %vm407 = vcmp.eq.s32.totalorder %v395, %v401
    %vm408 = vcmp.eq.s32.totalorder %v396, %v401
    %vm409 = vcmp.eq.s32.totalorder %v397, %v401
    %v410 = vsel %vm402, %v371, 0.0
    %v411 = vsel %vm403, %v372, 0.0
    %v412 = vsel %vm404, %v373, 0.0
    %v413 = vsel %vm405, %v374, 0.0
    %v414 = vsel %vm406, %v375, 0.0
    %v415 = vsel %vm407, %v376, 0.0
    %v416 = vsel %vm408, %v377, 0.0
    %v417 = vsel %vm409, %v378, 0.0
    %v418 = vadd.f32 %v410, %v411
    %v419 = vadd.f32 %v418, %v412
    %v420 = vadd.f32 %v419, %v413
    %v421 = vadd.f32 %v420, %v414
    %v422 = vadd.f32 %v421, %v415
    %v423 = vadd.f32 %v422, %v416
    %v424 = vadd.f32 %v423, %v417
    %425 = vadd.xlane.f32.xlu0 %v424
    %v426 = vpop.xlane.xlu0 %425
    %v427 = vmul.f32 %v426, 0.015625
    %v428 = vmul.f32 %v427, %v427
    %v429 = vsub.f32 1.0, %v428
    %v430 = vmax.f32 %v429, 0.0
    %v431 = vrsqrt.pop %v430
    %v432 = vmul.f32 %v431, %v430
    %v433 = vmul.f32 %v432, %v431
    %v434 = vmul.f32 0.5, %v433
    %v435 = vsub.f32 1.5, %v434
    %v436 = vmul.f32 %v431, %v435
    %v437 = vmul.f32 %v430, %v436
    %vm438 = vcmp.eq.f32.partialorder %v430, inf
    %v439 = vsel %vm438, %v430, %v437
    %vm440 = vcmp.eq.f32.partialorder %v430, 0.0
    %v441 = vand.u32 %v430, 2147483648
    %v442 = vsel %vm440, %v441, %v439
    %v443 = vmul.f32 %v427, 0.87758255
    %v444 = vmul.f32 %v442, 0.47942555
    %v445 = vsub.f32 %v443, %v444
    %v446 = vsub.f32 %v427, 0.23971277
    %v447 = vsub.f32 %v427, -0.87758255
    %vm448 = vcmp.le.f32.partialorder %v447, 0.0
    %v449 = vsel %vm448, %v446, %v445
    %v450 = vmul.f32 %v449, 64.0
    %v451 = vsel %vm402, %v450, %v371
    %v452 = vsel %vm403, %v450, %v372
    %v453 = vsel %vm404, %v450, %v373
    %v454 = vsel %vm405, %v450, %v374
    %v455 = vsel %vm406, %v450, %v375
    %v456 = vsel %vm407, %v450, %v376
    %v457 = vsel %vm408, %v450, %v377
    %v458 = vsel %vm409, %v450, %v378
    %459 = vst [vmem:[#allocation7] sm:$0xff] %v451
    %460 = vst [vmem:[#allocation7 + $0x8] sm:$0xff] %v452
    %461 = vst [vmem:[#allocation7 + $0x10] sm:$0xff] %v453
    %462 = vst [vmem:[#allocation7 + $0x18] sm:$0xff] %v454
    %463 = vst [vmem:[#allocation7 + $0x20] sm:$0xff] %v455
    %464 = vst [vmem:[#allocation7 + $0x28] sm:$0xff] %v456
    %465 = vst [vmem:[#allocation7 + $0x30] sm:$0xff] %v457
    %466 = vst [vmem:[#allocation7 + $0x38] sm:$0xff] %v458
    // Predicated region
    $region26: #{tpu_custom_call.1} parent=1 // pred_check
      _
    $region27: #{tpu_custom_call.1} parent=1 // pred_check_branch
      %468 = sbr.rel (0) target = $region29
    $region28: #{tpu_custom_call.1} parent=1 // pred_region
      %470 = vsyncadd [#allocation4], 0
      %s472 = sshll.u32 [#allocation7], 4
      %s473 = int_to_ptr.vmem [resolvable:$true] %s472
      %s474 = sshll.u32 %s4, 4
      %s475 = int_to_ptr.hbm [resolvable:$true] %s474
      %477 = dma.vmem_to_hbm [thread:$0]  %s473, 1024, %s475, [#allocation4]
    $region29: #{tpu_custom_call.1} parent=1 // pred_fallthru
      _
    // Predicated region
    $region30: #{tpu_custom_call.1} parent=1 // pred_check
      _
    $region31: #{tpu_custom_call.1} parent=1 // pred_check_branch
      %479 = sbr.rel (0) target = $region33
    $region32: #{tpu_custom_call.1} parent=1 // pred_region
      %481 = dma.done [#allocation4], 1024
    $region33: #{tpu_custom_call.1} parent=1 // pred_fallthru
      _
    %482 = vsyncpa [#allocation3], 1
    %483 = vsyncpa [#allocation6], 1
    %484 = vsyncpa [#allocation4], 1

</llo_original>
